<compile_context>
chip_gen: v7x
topology: tpu7x:2x2x1
jax: 0.10.0
libtpu: 0.0.40
codegen_flags: <defaults>
</compile_context>

<pallas_src>
import functools

import jax
import jax.numpy as jnp
from jax.experimental import pallas as pl
from jax.experimental.pallas import tpu as pltpu

LANE = 128
SUBLANE = 8


def _round_up(n, m):
    return ((n + m - 1) // m) * m


def _cdiv(a, b):
    return (a + b - 1) // b


def _pad2d(a, rows, cols):
    if a.shape == (rows, cols):
        return a
    return jnp.pad(a, ((0, rows - a.shape[0]), (0, cols - a.shape[1])))


def dni_kernel(x_ref, wcat_ref, bcat_ref, a1_ref, w2_ref, b2_ref, a2_ref,
               y_ref, d_ref):
    dp = y_ref.shape[1]  # padded D_out (multiple of 128)

    # Single wide matmul: x @ [W_um | W_um@W1]  (bf16 MXU operands, f32 acc).
    x = x_ref[...].astype(jnp.bfloat16)
    h = jnp.dot(x, wcat_ref[...],
                preferred_element_type=jnp.float32) + bcat_ref[...]

    # Left half: y = update_module(x).
    y_ref[...] = h[:, :dp].astype(y_ref.dtype)

    # Right half: pre-PReLU activation of synth_grad's first Linear
    # (exact:  x @ (W_um @ W1) + (b_um @ W1 + b1) = (x@W_um + b_um) @ W1 + b1).
    t = h[:, dp:]
    t = jnp.where(t >= 0.0, t, a1_ref[...] * t)            # PReLU(alpha1)
    t = jnp.dot(t.astype(jnp.bfloat16), w2_ref[...],
                preferred_element_type=jnp.float32) + b2_ref[...]
    t = jnp.where(t >= 0.0, t, a2_ref[...] * t)            # PReLU(alpha2)
    d_ref[...] = t.astype(d_ref.dtype)                      # delta (bf16)


@functools.partial(jax.jit, static_argnames=("tm",))
def dni_forward(x, params, tm=1024):
    """Returns (y, delta): update_module output and the synthetic gradient.

    y is float32; delta is bfloat16 (cast downstream if f32 is needed).
    """
    w_um, b_um, w1, b1, a1, w2, b2, a2 = params
    B, d_in = x.shape
    d_out = w_um.shape[1]

    dp_in = _round_up(d_in, LANE)
    dp_out = _round_up(d_out, LANE)

    # Batch tiling: big tiles (few grid steps), but keep nb >= 2 when possible
    # so the "parallel" axis can shard across both v7x TensorCores.
    b8 = _round_up(B, SUBLANE)
    tm_eff = max(SUBLANE, min(tm, _round_up(_cdiv(b8, 2), SUBLANE)))
    b_pad = _round_up(b8, tm_eff)
    nb = b_pad // tm_eff

    # Pad x only if actually needed (stays f32; cast to bf16 inside kernel).
    if (b_pad != B) or (dp_in != d_in):
        xp = jnp.pad(x, ((0, b_pad - B), (0, dp_in - d_in)))
    else:
        xp = x

    # Exact fusion of update_module and synth_grad[0] (done in f32, tiny).
    w_fused = w_um @ w1                       # (d_in, d_out)
    b_fused = b_um @ w1 + b1                  # (1, d_out)
    w_cat = jnp.concatenate(
        [_pad2d(w_um, dp_in, dp_out), _pad2d(w_fused, dp_in, dp_out)],
        axis=1).astype(jnp.bfloat16)          # (dp_in, 2*dp_out)
    b_cat = jnp.concatenate(
        [_pad2d(b_um, 1, dp_out), _pad2d(b_fused, 1, dp_out)], axis=1)  # f32
    w2_p = _pad2d(w2, dp_out, dp_out).astype(jnp.bfloat16)
    b2_p = _pad2d(b2, 1, dp_out)
    a1_p = _pad2d(a1, 1, dp_out)
    a2_p = _pad2d(a2, 1, dp_out)

    def resident(shape):
        # Constant index_map -> fetched once, stays VMEM-resident across batch
        # tiles; Buffered(1) avoids reserving a useless second buffer.
        return pl.BlockSpec(shape, lambda i: (0, 0),
                            pipeline_mode=pl.Buffered(1))

    # Realistic VMEM need for this kernel (double-buffered activations,
    # single-buffered resident weights) + headroom, capped at 48 MiB.
    bytes_needed = (
        2 * tm_eff * dp_in * 4            # x tiles (f32)
        + 2 * tm_eff * dp_out * 4         # y tiles (f32)
        + 2 * tm_eff * dp_out * 2         # delta tiles (bf16)
        + dp_in * 2 * dp_out * 2          # W_cat (bf16, single-buffered)
        + dp_out * dp_out * 2             # W2    (bf16, single-buffered)
        + 6 * dp_out * 4                  # biases / alphas
    )
    vmem_limit = int(min(48 * 1024 * 1024,
                         max(16 * 1024 * 1024,
                             2 * bytes_needed + 4 * 1024 * 1024)))

    y_pad, d_pad = pl.pallas_call(
        dni_kernel,
        out_shape=(
            jax.ShapeDtypeStruct((b_pad, dp_out), jnp.float32),    # y
            jax.ShapeDtypeStruct((b_pad, dp_out), jnp.bfloat16),   # delta
        ),
        grid=(nb,),
        in_specs=[
            pl.BlockSpec((tm_eff, dp_in), lambda i: (i, 0)),       # x tile
            resident((dp_in, 2 * dp_out)),                         # [W_um|W_fused]
            resident((1, 2 * dp_out)),                             # [b_um|b_fused]
            resident((1, dp_out)),                                 # alpha1
            resident((dp_out, dp_out)),                            # W2
            resident((1, dp_out)),                                 # b2
            resident((1, dp_out)),                                 # alpha2
        ],
        out_specs=(
            pl.BlockSpec((tm_eff, dp_out), lambda i: (i, 0)),
            pl.BlockSpec((tm_eff, dp_out), lambda i: (i, 0)),
        ),
        compiler_params=pltpu.CompilerParams(
            dimension_semantics=("parallel",),
            vmem_limit_bytes=vmem_limit),
    )(xp, w_cat, b_cat, a1_p, w2_p, b2_p, a2_p)

    # Slice only if padding was actually applied (otherwise identity).
    if (b_pad != B) or (dp_out != d_out):
        y_pad = y_pad[:B, :d_out]
        d_pad = d_pad[:B, :d_out]
    return y_pad, d_pad


def init_params(key, d_in, d_out):
    k_um_w, k_um_b, k_w1, k_w2 = jax.random.split(key, 4)

    # update_module: Linear(d_in, d_out), PyTorch default-ish uniform init.
    bound = 1.0 / (d_in ** 0.5)
    w_um = jax.random.uniform(k_um_w, (d_in, d_out), jnp.float32, -bound, bound)
    b_um = jax.random.uniform(k_um_b, (1, d_out), jnp.float32, -bound, bound)

    # synth_grad[0] / synth_grad[2]: weights U(-1e-6, 1e-6), biases zero.
    w1 = jax.random.uniform(k_w1, (d_out, d_out), jnp.float32, -1e-6, 1e-6)
    b1 = jnp.zeros((1, d_out), jnp.float32)
    w2 = jax.random.uniform(k_w2, (d_out, d_out), jnp.float32, -1e-6, 1e-6)
    b2 = jnp.zeros((1, d_out), jnp.float32)

    # PReLU(d_out): per-channel alpha, PyTorch default 0.25.
    a1 = jnp.full((1, d_out), 0.25, jnp.float32)
    a2 = jnp.full((1, d_out), 0.25, jnp.float32)

    return (w_um, b_um, w1, b1, a1, w2, b2, a2)


if __name__ == "__main__":
    key = jax.random.PRNGKey(0)
    k_x, k_p = jax.random.split(key)

    # update_num_out = 32; batch sized so the grid has 2 batch tiles
    # (exercises the parallel axis) while staying small.
    B, D_IN, D_OUT = 256, 32, 32
    x = jax.random.normal(k_x, (B, D_IN), jnp.float32)
    params = init_params(k_p, D_IN, D_OUT)

    y, delta = dni_forward(x, params)
    jax.block_until_ready((y, delta))

    # Pure-JAX f32 reference of the same forward.
    w_um, b_um, w1, b1, a1, w2, b2, a2 = params
    h_ref = x @ w_um + b_um
    t = h_ref @ w1 + b1
    t = jnp.where(t >= 0.0, t, a1 * t)
    t = t @ w2 + b2
    d_ref = jnp.where(t >= 0.0, t, a2 * t)

    assert y.shape == (B, D_OUT) and delta.shape == (B, D_OUT)
    delta_f32 = delta.astype(jnp.float32)
    assert bool(jnp.all(jnp.isfinite(y))) and bool(jnp.all(jnp.isfinite(delta_f32)))
    # bf16 MXU operands / bf16 delta storage -> loose tolerances; delta is
    # ~1e-9 in magnitude so compare relative to its scale.
    assert float(jnp.max(jnp.abs(y - h_ref))) < 1e-1
    d_scale = float(jnp.max(jnp.abs(d_ref))) + 1e-30
    assert float(jnp.max(jnp.abs(delta_f32 - d_ref))) / d_scale < 0.2

    print("KERNEL_OK")
</pallas_src>

<mosaic_0001>
module attributes {stable_mosaic.version = 11 : i64} {
  func.func @dni_kernel(%arg0: i32, %arg1: memref<128x128xf32, #tpu.memory_space<vmem>>, %arg2: memref<128x256xbf16, #tpu.memory_space<vmem>>, %arg3: memref<1x256xf32, #tpu.memory_space<vmem>>, %arg4: memref<1x128xf32, #tpu.memory_space<vmem>>, %arg5: memref<128x128xbf16, #tpu.memory_space<vmem>>, %arg6: memref<1x128xf32, #tpu.memory_space<vmem>>, %arg7: memref<1x128xf32, #tpu.memory_space<vmem>>, %arg8: memref<128x128xf32, #tpu.memory_space<vmem>>, %arg9: memref<128x128xbf16, #tpu.memory_space<vmem>>) attributes {dimension_semantics = [#tpu.dimension_semantics<parallel>], iteration_bounds = array<i64: 2>, scalar_prefetch = 0 : i64, scratch_operands = 0 : i64, tpu.core_type = #tpu.core_type<tc>, window_params = [{transform_indices = @transform_0, window_bounds = array<i64: 128, 128>}, {pipeline_mode = #tpu.pipeline_mode<synchronous>, transform_indices = @transform_1, window_bounds = array<i64: 128, 256>}, {pipeline_mode = #tpu.pipeline_mode<synchronous>, transform_indices = @transform_2, window_bounds = array<i64: 1, 256>}, {pipeline_mode = #tpu.pipeline_mode<synchronous>, transform_indices = @transform_3, window_bounds = array<i64: 1, 128>}, {pipeline_mode = #tpu.pipeline_mode<synchronous>, transform_indices = @transform_4, window_bounds = array<i64: 128, 128>}, {pipeline_mode = #tpu.pipeline_mode<synchronous>, transform_indices = @transform_5, window_bounds = array<i64: 1, 128>}, {pipeline_mode = #tpu.pipeline_mode<synchronous>, transform_indices = @transform_6, window_bounds = array<i64: 1, 128>}, {transform_indices = @transform_7, window_bounds = array<i64: 128, 128>}, {transform_indices = @transform_8, window_bounds = array<i64: 128, 128>}]} {
    %c0 = arith.constant 0 : index
    %c0_0 = arith.constant 0 : index
    %0 = vector.load %arg1[%c0, %c0_0] : memref<128x128xf32, #tpu.memory_space<vmem>>, vector<128x128xf32>
    %1 = arith.truncf %0 : vector<128x128xf32> to vector<128x128xbf16>
    %c0_1 = arith.constant 0 : index
    %c0_2 = arith.constant 0 : index
    %2 = vector.load %arg2[%c0_1, %c0_2] : memref<128x256xbf16, #tpu.memory_space<vmem>>, vector<128x256xbf16>
    %cst = arith.constant dense<0.000000e+00> : vector<128x256xf32>
    %3 = tpu.matmul %1, %2, %cst {dimension_numbers = #tpu.dot_dimension_numbers<[1], [0], [0], [1], [0, 0, 1, 1], [], []>} : vector<128x128xbf16>, vector<128x256xbf16>, vector<128x256xf32> -> vector<128x256xf32>
    %c0_3 = arith.constant 0 : index
    %c0_4 = arith.constant 0 : index
    %4 = vector.load %arg3[%c0_3, %c0_4] : memref<1x256xf32, #tpu.memory_space<vmem>>, vector<1x256xf32>
    %5 = vector.broadcast %4 : vector<1x256xf32> to vector<128x256xf32>
    %6 = arith.addf %3, %5 : vector<128x256xf32>
    %7 = vector.extract_strided_slice %6 {offsets = [0, 0], sizes = [128, 128], strides = [1, 1]} : vector<128x256xf32> to vector<128x128xf32>
    %c0_5 = arith.constant 0 : index
    %c0_6 = arith.constant 0 : index
    %8 = vector.load %arg8[%c0_5, %c0_6] : memref<128x128xf32, #tpu.memory_space<vmem>>, vector<128x128xf32>
    tpu.vector_store %arg8[%c0_5, %c0_6], %7 {strides = array<i32>} : memref<128x128xf32, #tpu.memory_space<vmem>>, vector<128x128xf32>,
    %9 = vector.extract_strided_slice %6 {offsets = [0, 128], sizes = [128, 128], strides = [1, 1]} : vector<128x256xf32> to vector<128x128xf32>
    %cst_7 = arith.constant 0.000000e+00 : f32
    %10 = vector.broadcast %cst_7 : f32 to vector<128x128xf32>
    %11 = arith.cmpf oge, %9, %10 : vector<128x128xf32>
    %c0_8 = arith.constant 0 : index
    %c0_9 = arith.constant 0 : index
    %12 = vector.load %arg4[%c0_8, %c0_9] : memref<1x128xf32, #tpu.memory_space<vmem>>, vector<1x128xf32>
    %13 = vector.broadcast %12 : vector<1x128xf32> to vector<128x128xf32>
    %14 = arith.mulf %13, %9 : vector<128x128xf32>
    %15 = arith.select %11, %9, %14 : vector<128x128xi1>, vector<128x128xf32>
    %16 = arith.truncf %15 : vector<128x128xf32> to vector<128x128xbf16>
    %c0_10 = arith.constant 0 : index
    %c0_11 = arith.constant 0 : index
    %17 = vector.load %arg5[%c0_10, %c0_11] : memref<128x128xbf16, #tpu.memory_space<vmem>>, vector<128x128xbf16>
    %cst_12 = arith.constant dense<0.000000e+00> : vector<128x128xf32>
    %18 = tpu.matmul %16, %17, %cst_12 {dimension_numbers = #tpu.dot_dimension_numbers<[1], [0], [0], [1], [0, 0, 1, 1], [], []>} : vector<128x128xbf16>, vector<128x128xbf16>, vector<128x128xf32> -> vector<128x128xf32>
    %c0_13 = arith.constant 0 : index
    %c0_14 = arith.constant 0 : index
    %19 = vector.load %arg6[%c0_13, %c0_14] : memref<1x128xf32, #tpu.memory_space<vmem>>, vector<1x128xf32>
    %20 = vector.broadcast %19 : vector<1x128xf32> to vector<128x128xf32>
    %21 = arith.addf %18, %20 : vector<128x128xf32>
    %cst_15 = arith.constant 0.000000e+00 : f32
    %22 = vector.broadcast %cst_15 : f32 to vector<128x128xf32>
    %23 = arith.cmpf oge, %21, %22 : vector<128x128xf32>
    %c0_16 = arith.constant 0 : index
    %c0_17 = arith.constant 0 : index
    %24 = vector.load %arg7[%c0_16, %c0_17] : memref<1x128xf32, #tpu.memory_space<vmem>>, vector<1x128xf32>
    %25 = vector.broadcast %24 : vector<1x128xf32> to vector<128x128xf32>
    %26 = arith.mulf %25, %21 : vector<128x128xf32>
    %27 = arith.select %23, %21, %26 : vector<128x128xi1>, vector<128x128xf32>
    %28 = arith.truncf %27 : vector<128x128xf32> to vector<128x128xbf16>
    %c0_18 = arith.constant 0 : index
    %c0_19 = arith.constant 0 : index
    %29 = vector.load %arg9[%c0_18, %c0_19] : memref<128x128xbf16, #tpu.memory_space<vmem>>, vector<128x128xbf16>
    tpu.vector_store %arg9[%c0_18, %c0_19], %28 {strides = array<i32>} : memref<128x128xbf16, #tpu.memory_space<vmem>>, vector<128x128xbf16>,
    return
  }
  func.func @transform_0(%arg0: i32) -> (i32, i32) {
    %c0_i32 = arith.constant 0 : i32
    %c0_i32_0 = arith.constant 0 : i32
    return %arg0, %c0_i32 : i32, i32
  }
  func.func @transform_1(%arg0: i32) -> (i32, i32) {
    %c0_i32 = arith.constant 0 : i32
    %c0_i32_0 = arith.constant 0 : i32
    %c0_i32_1 = arith.constant 0 : i32
    return %c0_i32, %c0_i32_0 : i32, i32
  }
  func.func @transform_2(%arg0: i32) -> (i32, i32) {
    %c0_i32 = arith.constant 0 : i32
    %c0_i32_0 = arith.constant 0 : i32
    %c0_i32_1 = arith.constant 0 : i32
    return %c0_i32, %c0_i32_0 : i32, i32
  }
  func.func @transform_3(%arg0: i32) -> (i32, i32) {
    %c0_i32 = arith.constant 0 : i32
    %c0_i32_0 = arith.constant 0 : i32
    %c0_i32_1 = arith.constant 0 : i32
    return %c0_i32, %c0_i32_0 : i32, i32
  }
  func.func @transform_4(%arg0: i32) -> (i32, i32) {
    %c0_i32 = arith.constant 0 : i32
    %c0_i32_0 = arith.constant 0 : i32
    %c0_i32_1 = arith.constant 0 : i32
    return %c0_i32, %c0_i32_0 : i32, i32
  }
  func.func @transform_5(%arg0: i32) -> (i32, i32) {
    %c0_i32 = arith.constant 0 : i32
    %c0_i32_0 = arith.constant 0 : i32
    %c0_i32_1 = arith.constant 0 : i32
    return %c0_i32, %c0_i32_0 : i32, i32
  }
  func.func @transform_6(%arg0: i32) -> (i32, i32) {
    %c0_i32 = arith.constant 0 : i32
    %c0_i32_0 = arith.constant 0 : i32
    %c0_i32_1 = arith.constant 0 : i32
    return %c0_i32, %c0_i32_0 : i32, i32
  }
  func.func @transform_7(%arg0: i32) -> (i32, i32) {
    %c0_i32 = arith.constant 0 : i32
    %c0_i32_0 = arith.constant 0 : i32
    return %arg0, %c0_i32 : i32, i32
  }
  func.func @transform_8(%arg0: i32) -> (i32, i32) {
    %c0_i32 = arith.constant 0 : i32
    %c0_i32_0 = arith.constant 0 : i32
    return %arg0, %c0_i32 : i32, i32
  }
}

</mosaic_0001>

<llo_original>
// kernel: dni_forward.1
$region0: #{dni_forward.1}
  #allocation0 [shape = 'u32[]', space=smem, size = 0x4, offset = 0x4, fixed_abs, tag = 'smem constant byte address 0x4 - core index']
  #allocation1 [shape = 'u32[144,128]{1,0:T(1,128)}', space=vmem, size = 0x12000, scoped, tag = 'internal scratch']
  %s0 = inlined_call_operand.vmem [shape: f32[256,128], index: 0, kind: input, shape index: {}]
  %s1 = inlined_call_operand.vmem [shape: bf16[128,256], index: 1, kind: input, shape index: {}]
  %s2 = inlined_call_operand.vmem [shape: f32[1,256], index: 2, kind: input, shape index: {}]
  %s3 = inlined_call_operand.vmem [shape: f32[1,128], index: 3, kind: input, shape index: {}]
  %s4 = inlined_call_operand.vmem [shape: bf16[128,128], index: 4, kind: input, shape index: {}]
  %s5 = inlined_call_operand.vmem [shape: f32[1,128], index: 5, kind: input, shape index: {}]
  %s6 = inlined_call_operand.vmem [shape: f32[1,128], index: 6, kind: input, shape index: {}]
  %s7 = inlined_call_operand.vmem [shape: f32[256,128], index: 7, kind: output, shape index: {0}]
  %s8 = inlined_call_operand.vmem [shape: bf16[256,128], index: 8, kind: output, shape index: {1}]
  %9 = xla_tuple %s7, %s8
  %s10 = sld [smem:[#allocation0]]
  $region69: #{dni_forward.1} parent=0
    _
  %s12 = ssub.s32 1, %s10
  %s13 = scalar_select 0, %s12, %s10
  loop: start=0, step=1, limit=4
  $region2: #{dni_forward.1} parent=0 // loop_pre_header
    _
  $region3: #{dni_forward.1} parent=0 // loop_header
    %s15 = sphi 0, %s19
    %p16 = scmp.ge.s32.totalorder %s15, 4
    %s25 = sphi 0, %s27
    %s28 = sphi 0, %s25
    %s29 = sphi 0, %s28
    %s45 = sphi 0, %s29
    %s49 = sphi 0, %s49
    %s51 = sphi 0, %s49
    %s52 = sphi 0, %s51
    %s66 = sphi 0, %s52
    %s70 = sphi 0, %s70
    %s72 = sphi 0, %s70
    %s73 = sphi 0, %s72
    %s87 = sphi 0, %s73
    %s91 = sphi 0, %s91
    %s93 = sphi 0, %s91
    %s94 = sphi 0, %s93
    %s108 = sphi 0, %s94
    %s112 = sphi 0, %s112
    %s114 = sphi 0, %s112
    %s115 = sphi 0, %s114
    %s129 = sphi 0, %s115
    %s133 = sphi 0, %s133
    %s135 = sphi 0, %s133
    %s136 = sphi 0, %s135
    %s150 = sphi 0, %s136
    %s154 = sphi 0, %s154
    %s156 = sphi 0, %s154
    %s157 = sphi 0, %s156
    %s171 = sphi 0, %s157
    %s177 = sphi 0, %s179
    %s180 = sphi 0, %s177
    %s181 = sphi 0, %s180
    %s197 = sphi 0, %s181
    %s203 = sphi 0, %s205
    %s206 = sphi 0, %s203
    %s207 = sphi 0, %s206
    %s223 = sphi 0, %s207
  $region4: #{dni_forward.1} parent=0 // loop_header_branch
    %18 = sbr.rel (%p16) target = $region8
  $region5: #{dni_forward.1} parent=0 // loop_body
    %s20 = ssub.s32 %s15, 1
    %s21 = ssub.s32 %s15, 2
    %s22 = sadd.s32 %s15, 1
    %s23 = ssub.s32 %s15, %s22
    %p24 = scmp.eq.s32.totalorder %s23, 0
    %s26 = sadd.s32 %s25, 1
    %s27 = scalar_select %p24, %s25, %s26
    %p30 = pneg %p24
    %p31 = scmp.eq.s32.totalorder %s15, 1
    %p32 = por %p30, %p31
    %p33 = scmp.ne.s32.totalorder %s25, %s28
    %p34 = scmp.eq.s32.totalorder %s15, 0
    %p35 = por %p33, %p34
    %p36 = scmp.ne.s32.totalorder %s25, %s28
    %p37 = scmp.eq.s32.totalorder %s20, 1
    %p38 = por %p36, %p37
    %p39 = scmp.ne.s32.totalorder %s28, %s29
    %p40 = scmp.eq.s32.totalorder %s20, 0
    %p41 = por %p39, %p40
    %p42 = scmp.ne.s32.totalorder %s28, %s29
    %p43 = scmp.eq.s32.totalorder %s21, 1
    %p44 = por %p42, %p43
    %p46 = scmp.ne.s32.totalorder %s29, %s45
    %p47 = scmp.eq.s32.totalorder %s21, 0
    %p48 = por %p46, %p47
    %s50 = sadd.s32 %s49, 1
    %p53 = scmp.eq.s32.totalorder %s15, 1
    %p54 = scmp.ne.s32.totalorder %s49, %s51
    %p55 = scmp.eq.s32.totalorder %s15, 0
    %p56 = por %p54, %p55
    %p57 = scmp.ne.s32.totalorder %s49, %s51
    %p58 = scmp.eq.s32.totalorder %s20, 1
    %p59 = por %p57, %p58
    %p60 = scmp.ne.s32.totalorder %s51, %s52
    %p61 = scmp.eq.s32.totalorder %s20, 0
    %p62 = por %p60, %p61
    %p63 = scmp.ne.s32.totalorder %s51, %s52
    %p64 = scmp.eq.s32.totalorder %s21, 1
    %p65 = por %p63, %p64
    %p67 = scmp.ne.s32.totalorder %s52, %s66
    %p68 = scmp.eq.s32.totalorder %s21, 0
    %p69 = por %p67, %p68
    %s71 = sadd.s32 %s70, 1
    %p74 = scmp.eq.s32.totalorder %s15, 1
    %p75 = scmp.ne.s32.totalorder %s70, %s72
    %p76 = scmp.eq.s32.totalorder %s15, 0
    %p77 = por %p75, %p76
    %p78 = scmp.ne.s32.totalorder %s70, %s72
    %p79 = scmp.eq.s32.totalorder %s20, 1
    %p80 = por %p78, %p79
    %p81 = scmp.ne.s32.totalorder %s72, %s73
    %p82 = scmp.eq.s32.totalorder %s20, 0
    %p83 = por %p81, %p82
    %p84 = scmp.ne.s32.totalorder %s72, %s73
    %p85 = scmp.eq.s32.totalorder %s21, 1
    %p86 = por %p84, %p85
    %p88 = scmp.ne.s32.totalorder %s73, %s87
    %p89 = scmp.eq.s32.totalorder %s21, 0
    %p90 = por %p88, %p89
    %s92 = sadd.s32 %s91, 1
    %p95 = scmp.eq.s32.totalorder %s15, 1
    %p96 = scmp.ne.s32.totalorder %s91, %s93
    %p97 = scmp.eq.s32.totalorder %s15, 0
    %p98 = por %p96, %p97
    %p99 = scmp.ne.s32.totalorder %s91, %s93
    %p100 = scmp.eq.s32.totalorder %s20, 1
    %p101 = por %p99, %p100
    %p102 = scmp.ne.s32.totalorder %s93, %s94
    %p103 = scmp.eq.s32.totalorder %s20, 0
    %p104 = por %p102, %p103
    %p105 = scmp.ne.s32.totalorder %s93, %s94
    %p106 = scmp.eq.s32.totalorder %s21, 1
    %p107 = por %p105, %p106
    %p109 = scmp.ne.s32.totalorder %s94, %s108
    %p110 = scmp.eq.s32.totalorder %s21, 0
    %p111 = por %p109, %p110
    %s113 = sadd.s32 %s112, 1
    %p116 = scmp.eq.s32.totalorder %s15, 1
    %p117 = scmp.ne.s32.totalorder %s112, %s114
    %p118 = scmp.eq.s32.totalorder %s15, 0
    %p119 = por %p117, %p118
    %p120 = scmp.ne.s32.totalorder %s112, %s114
    %p121 = scmp.eq.s32.totalorder %s20, 1
    %p122 = por %p120, %p121
    %p123 = scmp.ne.s32.totalorder %s114, %s115
    %p124 = scmp.eq.s32.totalorder %s20, 0
    %p125 = por %p123, %p124
    %p126 = scmp.ne.s32.totalorder %s114, %s115
    %p127 = scmp.eq.s32.totalorder %s21, 1
    %p128 = por %p126, %p127
    %p130 = scmp.ne.s32.totalorder %s115, %s129
    %p131 = scmp.eq.s32.totalorder %s21, 0
    %p132 = por %p130, %p131
    %s134 = sadd.s32 %s133, 1
    %p137 = scmp.eq.s32.totalorder %s15, 1
    %p138 = scmp.ne.s32.totalorder %s133, %s135
    %p139 = scmp.eq.s32.totalorder %s15, 0
    %p140 = por %p138, %p139
    %p141 = scmp.ne.s32.totalorder %s133, %s135
    %p142 = scmp.eq.s32.totalorder %s20, 1
    %p143 = por %p141, %p142
    %p144 = scmp.ne.s32.totalorder %s135, %s136
    %p145 = scmp.eq.s32.totalorder %s20, 0
    %p146 = por %p144, %p145
    %p147 = scmp.ne.s32.totalorder %s135, %s136
    %p148 = scmp.eq.s32.totalorder %s21, 1
    %p149 = por %p147, %p148
    %p151 = scmp.ne.s32.totalorder %s136, %s150
    %p152 = scmp.eq.s32.totalorder %s21, 0
    %p153 = por %p151, %p152
    %s155 = sadd.s32 %s154, 1
    %p158 = scmp.eq.s32.totalorder %s15, 1
    %p159 = scmp.ne.s32.totalorder %s154, %s156
    %p160 = scmp.eq.s32.totalorder %s15, 0
    %p161 = por %p159, %p160
    %p162 = scmp.ne.s32.totalorder %s154, %s156
    %p163 = scmp.eq.s32.totalorder %s20, 1
    %p164 = por %p162, %p163
    %p165 = scmp.ne.s32.totalorder %s156, %s157
    %p166 = scmp.eq.s32.totalorder %s20, 0
    %p167 = por %p165, %p166
    %p168 = scmp.ne.s32.totalorder %s156, %s157
    %p169 = scmp.eq.s32.totalorder %s21, 1
    %p170 = por %p168, %p169
    %p172 = scmp.ne.s32.totalorder %s157, %s171
    %p173 = scmp.eq.s32.totalorder %s21, 0
    %p174 = por %p172, %p173
    %s175 = ssub.s32 %s15, %s22
    %p176 = scmp.eq.s32.totalorder %s175, 0
    %s178 = sadd.s32 %s177, 1
    %s179 = scalar_select %p176, %s177, %s178
    %p182 = pneg %p176
    %p183 = scmp.eq.s32.totalorder %s15, 1
    %p184 = por %p182, %p183
    %p185 = scmp.ne.s32.totalorder %s177, %s180
    %p186 = scmp.eq.s32.totalorder %s15, 0
    %p187 = por %p185, %p186
    %p188 = scmp.ne.s32.totalorder %s177, %s180
    %p189 = scmp.eq.s32.totalorder %s20, 1
    %p190 = por %p188, %p189
    %p191 = scmp.ne.s32.totalorder %s180, %s181
    %p192 = scmp.eq.s32.totalorder %s20, 0
    %p193 = por %p191, %p192
    %p194 = scmp.ne.s32.totalorder %s180, %s181
    %p195 = scmp.eq.s32.totalorder %s21, 1
    %p196 = por %p194, %p195
    %p198 = scmp.ne.s32.totalorder %s181, %s197
    %p199 = scmp.eq.s32.totalorder %s21, 0
    %p200 = por %p198, %p199
    %s201 = ssub.s32 %s15, %s22
    %p202 = scmp.eq.s32.totalorder %s201, 0
    %s204 = sadd.s32 %s203, 1
    %s205 = scalar_select %p202, %s203, %s204
    %p208 = pneg %p202
    %p209 = scmp.eq.s32.totalorder %s15, 1
    %p210 = por %p208, %p209
    %p211 = scmp.ne.s32.totalorder %s203, %s206
    %p212 = scmp.eq.s32.totalorder %s15, 0
    %p213 = por %p211, %p212
    %p214 = scmp.ne.s32.totalorder %s203, %s206
    %p215 = scmp.eq.s32.totalorder %s20, 1
    %p216 = por %p214, %p215
    %p217 = scmp.ne.s32.totalorder %s206, %s207
    %p218 = scmp.eq.s32.totalorder %s20, 0
    %p219 = por %p217, %p218
    %p220 = scmp.ne.s32.totalorder %s206, %s207
    %p221 = scmp.eq.s32.totalorder %s21, 1
    %p222 = por %p220, %p221
    %p224 = scmp.ne.s32.totalorder %s207, %s223
    %p225 = scmp.eq.s32.totalorder %s21, 0
    %p226 = por %p224, %p225
    %p227 = scmp.le.s32.totalorder 1, %s15
    %p228 = scmp.lt.s32.totalorder %s15, 3
    %p229 = pnand %p227, %p228
    %p230 = pneg %p229
    // Predicated region
    $region9: #{dni_forward.1} parent=5 // pred_check
      _
    $region10: #{dni_forward.1} parent=5 // pred_check_branch
      %232 = sbr.rel (%p229) target = $region12
    $region11: #{dni_forward.1} parent=5 // pred_region
      %s233 = ssub.s32 %s15, 1
      // Predicated region
      $region13: #{dni_forward.1} parent=11 // pred_check
        %p234 = pneg %p62
      $region14: #{dni_forward.1} parent=11 // pred_check_branch
        %236 = sbr.rel (%p234) target = $region16
      $region15: #{dni_forward.1} parent=11 // pred_region
        _
      $region16: #{dni_forward.1} parent=11 // pred_fallthru
        _
      // Predicated region
      $region17: #{dni_forward.1} parent=11 // pred_check
        %p237 = pneg %p83
      $region18: #{dni_forward.1} parent=11 // pred_check_branch
        %239 = sbr.rel (%p237) target = $region20
      $region19: #{dni_forward.1} parent=11 // pred_region
        _
      $region20: #{dni_forward.1} parent=11 // pred_fallthru
        _
      // Predicated region
      $region21: #{dni_forward.1} parent=11 // pred_check
        %p240 = pneg %p104
      $region22: #{dni_forward.1} parent=11 // pred_check_branch
        %242 = sbr.rel (%p240) target = $region24
      $region23: #{dni_forward.1} parent=11 // pred_region
        _
      $region24: #{dni_forward.1} parent=11 // pred_fallthru
        _
      // Predicated region
      $region25: #{dni_forward.1} parent=11 // pred_check
        %p243 = pneg %p125
      $region26: #{dni_forward.1} parent=11 // pred_check_branch
        %245 = sbr.rel (%p243) target = $region28
      $region27: #{dni_forward.1} parent=11 // pred_region
        _
      $region28: #{dni_forward.1} parent=11 // pred_fallthru
        _
      // Predicated region
      $region29: #{dni_forward.1} parent=11 // pred_check
        %p246 = pneg %p146
      $region30: #{dni_forward.1} parent=11 // pred_check_branch
        %248 = sbr.rel (%p246) target = $region32
      $region31: #{dni_forward.1} parent=11 // pred_region
        _
      $region32: #{dni_forward.1} parent=11 // pred_fallthru
        _
      // Predicated region
      $region33: #{dni_forward.1} parent=11 // pred_check
        %p249 = pneg %p167
      $region34: #{dni_forward.1} parent=11 // pred_check_branch
        %251 = sbr.rel (%p249) target = $region36
      $region35: #{dni_forward.1} parent=11 // pred_region
        _
      $region36: #{dni_forward.1} parent=11 // pred_fallthru
        _
    $region12: #{dni_forward.1} parent=5 // pred_fallthru
      _
    %p252 = scmp.lt.s32.totalorder %s15, 2
    // Predicated region
    $region37: #{dni_forward.1} parent=5 // pred_check
      %p253 = pneg %p252
    $region38: #{dni_forward.1} parent=5 // pred_check_branch
      %255 = sbr.rel (%p253) target = $region40
    $region39: #{dni_forward.1} parent=5 // pred_region
      // Predicated region
      $region41: #{dni_forward.1} parent=39 // pred_check
        %p256 = pneg %p35
      $region42: #{dni_forward.1} parent=39 // pred_check_branch
        %258 = sbr.rel (%p256) target = $region44
      $region43: #{dni_forward.1} parent=39 // pred_region
        %s259 = smul.u32 16, %s15
        %p260 = scmp.lt.s32.totalorder %s259, 31
        %s261 = scalar_select %p260, %s259, 31
        %s262 = smul.addr %s261, 8
        %s263 = scalar_lea.vmem %s0, %s262
        %s264 = smul.u32 16, %s15
      $region44: #{dni_forward.1} parent=39 // pred_fallthru
        _
    $region40: #{dni_forward.1} parent=5 // pred_fallthru
      _
    %p265 = scmp.le.s32.totalorder 1, %s15
    %p266 = scmp.lt.s32.totalorder %s15, 3
    %p267 = pnand %p265, %p266
    %p268 = pneg %p267
    // Predicated region
    $region45: #{dni_forward.1} parent=5 // pred_check
      _
    $region46: #{dni_forward.1} parent=5 // pred_check_branch
      %270 = sbr.rel (%p267) target = $region48
    $region47: #{dni_forward.1} parent=5 // pred_region
      %s271 = ssub.s32 %s15, 1
      %s272 = smul.u32 16, %s20
      %p273 = scmp.lt.s32.totalorder %s272, 31
      %s274 = scalar_select %p273, %s272, 31
      %s275 = smul.addr %s274, 8
      %s276 = scalar_lea.vmem %s0, %s275
      %p277 = pneg %p41
      %p278 = pneg %p38
      %p279 = pneg %p62
      %p280 = pneg %p59
      %p281 = pneg %p83
      %p282 = pneg %p80
      %p283 = pneg %p104
      %p284 = pneg %p101
      %p285 = pneg %p125
      %p286 = pneg %p122
      %p287 = pneg %p146
      %p288 = pneg %p143
      %p289 = pneg %p167
      %p290 = pneg %p164
      %p291 = pneg %p193
      %p292 = pneg %p190
      %s293 = smul.u32 16, %s20
      %p294 = scmp.lt.s32.totalorder %s293, 31
      %s295 = scalar_select %p294, %s293, 31
      %s296 = smul.addr %s295, 8
      %s297 = scalar_lea.vmem %s7, %s296
      %p298 = pneg %p219
      %p299 = pneg %p216
      %s300 = smul.u32 16, %s20
      %p301 = scmp.lt.s32.totalorder %s300, 31
      %s302 = scalar_select %p301, %s300, 31
      %s303 = smul.addr %s302, 4
      %s304 = scalar_lea.vmem %s8, %s303
      %s305 = smul.u32 16, %s20
      %p306 = scmp.lt.s32.totalorder %s305, 31
      %s307 = scalar_select %p306, %s305, 31
      %s308 = smul.addr %s307, 8
      %s309 = scalar_lea.vmem %s0, %s308
      %s310 = smul.u32 16, %s20
      %s311 = smul.u32 16, %s20
      %p312 = scmp.lt.s32.totalorder %s311, 31
      %s313 = scalar_select %p312, %s311, 31
      %s314 = smul.addr %s313, 8
      %s315 = scalar_lea.vmem %s7, %s314
      %s316 = smul.u32 16, %s20
      %s317 = smul.u32 16, %s20
      %p318 = scmp.lt.s32.totalorder %s317, 31
      %s319 = scalar_select %p318, %s317, 31
      %s320 = smul.addr %s319, 4
      %s321 = scalar_lea.vmem %s8, %s320
      %s322 = smul.u32 16, %s20
      %v324 = vld [vmem:[%s309] sm:$0xff]
      %v325 = vld [vmem:[%s309 + $0x8] sm:$0xff]
      %v326 = vld [vmem:[%s309 + $0x10] sm:$0xff]
      %v327 = vld [vmem:[%s309 + $0x18] sm:$0xff]
      %v328 = vld [vmem:[%s309 + $0x20] sm:$0xff]
      %v329 = vld [vmem:[%s309 + $0x28] sm:$0xff]
      %v330 = vld [vmem:[%s309 + $0x30] sm:$0xff]
      %v331 = vld [vmem:[%s309 + $0x38] sm:$0xff]
      %v332 = vld [vmem:[%s309 + $0x40] sm:$0xff]
      %v333 = vld [vmem:[%s309 + $0x48] sm:$0xff]
      %v334 = vld [vmem:[%s309 + $0x50] sm:$0xff]
      %v335 = vld [vmem:[%s309 + $0x58] sm:$0xff]
      %v336 = vld [vmem:[%s309 + $0x60] sm:$0xff]
      %v337 = vld [vmem:[%s309 + $0x68] sm:$0xff]
      %v338 = vld [vmem:[%s309 + $0x70] sm:$0xff]
      %v339 = vld [vmem:[%s309 + $0x78] sm:$0xff]
      %v340 = vpack.c.bf16 %v325, %v324
      %v341 = vpack.c.bf16 %v327, %v326
      %v342 = vpack.c.bf16 %v329, %v328
      %v343 = vpack.c.bf16 %v331, %v330
      %v344 = vpack.c.bf16 %v333, %v332
      %v345 = vpack.c.bf16 %v335, %v334
      %v346 = vpack.c.bf16 %v337, %v336
      %v347 = vpack.c.bf16 %v339, %v338
      %v348 = vld [vmem:[%s1] sm:$0xff]
      %v349 = vld [vmem:[%s1 + $0x8] sm:$0xff]
      %v350 = vld [vmem:[%s1 + $0x10] sm:$0xff]
      %v351 = vld [vmem:[%s1 + $0x18] sm:$0xff]
      %v352 = vld [vmem:[%s1 + $0x20] sm:$0xff]
      %v353 = vld [vmem:[%s1 + $0x28] sm:$0xff]
      %v354 = vld [vmem:[%s1 + $0x30] sm:$0xff]
      %v355 = vld [vmem:[%s1 + $0x38] sm:$0xff]
      %v356 = vld [vmem:[%s1 + $0x40] sm:$0xff]
      %v357 = vld [vmem:[%s1 + $0x48] sm:$0xff]
      %v358 = vld [vmem:[%s1 + $0x50] sm:$0xff]
      %v359 = vld [vmem:[%s1 + $0x58] sm:$0xff]
      %v360 = vld [vmem:[%s1 + $0x60] sm:$0xff]
      %v361 = vld [vmem:[%s1 + $0x68] sm:$0xff]
      %v362 = vld [vmem:[%s1 + $0x70] sm:$0xff]
      %v363 = vld [vmem:[%s1 + $0x78] sm:$0xff]
      %v364 = vld [vmem:[%s2] sm:$0x3]
      %v366 = vlaneseq
      %v367 = vshrl.u32 %v366, 7
      %v368 = vsub.s32 0, %v367
      %v369 = vrot.slane %v364, %v368
      %v370 = vlaneseq
      %v371 = vshrl.u32 %v370, 7
      %v372 = vsub.s32 1, %v371
      %v373 = vrot.slane %v364, %v372
      %v392 = vunpack.c.l.b16 %v348
      %v393 = vunpack.c.h.b16 %v348
      %v394 = vunpack.c.l.b16 %v349
      %v395 = vunpack.c.h.b16 %v349
      %v396 = vunpack.c.l.b16 %v350
      %v397 = vunpack.c.h.b16 %v350
      %v398 = vunpack.c.l.b16 %v351
      %v399 = vunpack.c.h.b16 %v351
      %v400 = vunpack.c.l.b16 %v352
      %v401 = vunpack.c.h.b16 %v352
      %v402 = vunpack.c.l.b16 %v353
      %v403 = vunpack.c.h.b16 %v353
      %v404 = vunpack.c.l.b16 %v354
      %v405 = vunpack.c.h.b16 %v354
      %v406 = vunpack.c.l.b16 %v355
      %v407 = vunpack.c.h.b16 %v355
      %v408 = vunpack.c.l.b16 %v356
      %v409 = vunpack.c.h.b16 %v356
      %v410 = vunpack.c.l.b16 %v357
      %v411 = vunpack.c.h.b16 %v357
      %v412 = vunpack.c.l.b16 %v358
      %v413 = vunpack.c.h.b16 %v358
      %v414 = vunpack.c.l.b16 %v359
      %v415 = vunpack.c.h.b16 %v359
      %v416 = vunpack.c.l.b16 %v360
      %v417 = vunpack.c.h.b16 %v360
      %v418 = vunpack.c.l.b16 %v361
      %v419 = vunpack.c.h.b16 %v361
      %v420 = vunpack.c.l.b16 %v362
      %v421 = vunpack.c.h.b16 %v362
      %v422 = vunpack.c.l.b16 %v363
      %v423 = vunpack.c.h.b16 %v363
      %v424 = vpack.c.b16 %v394, %v392
      %v425 = vpack.c.b16 %v395, %v393
      %v426 = vpack.c.b16 %v398, %v396
      %v427 = vpack.c.b16 %v399, %v397
      %v428 = vpack.c.b16 %v402, %v400
      %v429 = vpack.c.b16 %v403, %v401
      %v430 = vpack.c.b16 %v406, %v404
      %v431 = vpack.c.b16 %v407, %v405
      %v432 = vpack.c.b16 %v410, %v408
      %v433 = vpack.c.b16 %v411, %v409
      %v434 = vpack.c.b16 %v414, %v412
      %v435 = vpack.c.b16 %v415, %v413
      %v436 = vpack.c.b16 %v418, %v416
      %v437 = vpack.c.b16 %v419, %v417
      %v438 = vpack.c.b16 %v422, %v420
      %v439 = vpack.c.b16 %v423, %v421
      %456 = vmatprep.subr.bf16.mxu0 %v425
      %457 = vmatpush1.bf16.msra.mxu0 %v424
      %458 = vmatprep.subr.bf16.mxu0 %v427
      %459 = vmatpush1.bf16.msra.mxu0 %v426
      %460 = vmatprep.subr.bf16.mxu0 %v429
      %461 = vmatpush1.bf16.msra.mxu0 %v428
      %462 = vmatprep.subr.bf16.mxu0 %v431
      %463 = vmatpush1.bf16.msra.mxu0 %v430
      %464 = vmatprep.subr.bf16.mxu0 %v433
      %465 = vmatpush1.bf16.msra.mxu0 %v432
      %466 = vmatprep.subr.bf16.mxu0 %v435
      %467 = vmatpush1.bf16.msra.mxu0 %v434
      %468 = vmatprep.subr.bf16.mxu0 %v437
      %469 = vmatpush1.bf16.msra.mxu0 %v436
      %470 = vmatprep.subr.bf16.mxu0 %v439
      %471 = vmatpush1.bf16.msra.mxu0 %v438
      %472 = vmatprep.subr.bf16.mxu0 0
      %473 = vmatpush1.bf16.msra.mxu0 0
      %474 = vmatprep.subr.bf16.mxu0 0
      %475 = vmatpush1.bf16.msra.mxu0 0
      %476 = vmatprep.subr.bf16.mxu0 0
      %477 = vmatpush1.bf16.msra.mxu0 0
      %478 = vmatprep.subr.bf16.mxu0 0
      %479 = vmatpush1.bf16.msra.mxu0 0
      %480 = vmatprep.subr.bf16.mxu0 0
      %481 = vmatpush1.bf16.msra.mxu0 0
      %482 = vmatprep.subr.bf16.mxu0 0
      %483 = vmatpush1.bf16.msra.mxu0 0
      %484 = vmatprep.subr.bf16.mxu0 0
      %485 = vmatpush1.bf16.msra.mxu0 0
      %486 = vmatprep.subr.bf16.mxu0 0
      %487 = vmatpush1.bf16.msra.mxu0 0
      %488 = vmatprep.mubr.bf16.mxu0 0
      %489 = vmatmul.mubr.bf16.gmra.mrb[0].mxu0 %v340
      %v490 = vpop.f32.mrb[0].mxu0
      %v491 = vadd.f32 %v369, %v490
      %v492 = vpop.f32.mrb[0].mxu0
      %v493 = vadd.f32 %v373, %v492
      %v494 = vpop.f32.mrb[0].mxu0
      %v495 = vadd.f32 %v369, %v494
      %v496 = vpop.f32.mrb[0].mxu0
      %v497 = vadd.f32 %v373, %v496
      %498 = vmatprep.mubr.bf16.mxu0 0
      %499 = vmatmul.mubr.bf16.gmra.mrb[0].mxu0 %v341
      %v500 = vpop.f32.mrb[0].mxu0
      %v501 = vadd.f32 %v369, %v500
      %v502 = vpop.f32.mrb[0].mxu0
      %v503 = vadd.f32 %v373, %v502
      %v504 = vpop.f32.mrb[0].mxu0
      %v505 = vadd.f32 %v369, %v504
      %v506 = vpop.f32.mrb[0].mxu0
      %v507 = vadd.f32 %v373, %v506
      %508 = vmatprep.mubr.bf16.mxu0 0
      %509 = vmatmul.mubr.bf16.gmra.mrb[0].mxu0 %v342
      %v510 = vpop.f32.mrb[0].mxu0
      %v511 = vadd.f32 %v369, %v510
      %v512 = vpop.f32.mrb[0].mxu0
      %v513 = vadd.f32 %v373, %v512
      %v514 = vpop.f32.mrb[0].mxu0
      %v515 = vadd.f32 %v369, %v514
      %v516 = vpop.f32.mrb[0].mxu0
      %v517 = vadd.f32 %v373, %v516
      %518 = vmatprep.mubr.bf16.mxu0 0
      %519 = vmatmul.mubr.bf16.gmra.mrb[0].mxu0 %v343
      %v520 = vpop.f32.mrb[0].mxu0
      %v521 = vadd.f32 %v369, %v520
      %v522 = vpop.f32.mrb[0].mxu0
      %v523 = vadd.f32 %v373, %v522
      %v524 = vpop.f32.mrb[0].mxu0
      %v525 = vadd.f32 %v369, %v524
      %v526 = vpop.f32.mrb[0].mxu0
      %v527 = vadd.f32 %v373, %v526
      %528 = vmatprep.mubr.bf16.mxu0 0
      %529 = vmatmul.mubr.bf16.gmra.mrb[0].mxu0 %v344
      %v530 = vpop.f32.mrb[0].mxu0
      %v531 = vadd.f32 %v369, %v530
      %v532 = vpop.f32.mrb[0].mxu0
      %v533 = vadd.f32 %v373, %v532
      %v534 = vpop.f32.mrb[0].mxu0
      %v535 = vadd.f32 %v369, %v534
      %v536 = vpop.f32.mrb[0].mxu0
      %v537 = vadd.f32 %v373, %v536
      %538 = vmatprep.mubr.bf16.mxu0 0
      %539 = vmatmul.mubr.bf16.gmra.mrb[0].mxu0 %v345
      %v540 = vpop.f32.mrb[0].mxu0
      %v541 = vadd.f32 %v369, %v540
      %v542 = vpop.f32.mrb[0].mxu0
      %v543 = vadd.f32 %v373, %v542
      %v544 = vpop.f32.mrb[0].mxu0
      %v545 = vadd.f32 %v369, %v544
      %v546 = vpop.f32.mrb[0].mxu0
      %v547 = vadd.f32 %v373, %v546
      %548 = vmatprep.mubr.bf16.mxu0 0
      %549 = vmatmul.mubr.bf16.gmra.mrb[0].mxu0 %v346
      %v550 = vpop.f32.mrb[0].mxu0
      %v551 = vadd.f32 %v369, %v550
      %v552 = vpop.f32.mrb[0].mxu0
      %v553 = vadd.f32 %v373, %v552
      %v554 = vpop.f32.mrb[0].mxu0
      %v555 = vadd.f32 %v369, %v554
      %v556 = vpop.f32.mrb[0].mxu0
      %v557 = vadd.f32 %v373, %v556
      %558 = vmatprep.mubr.bf16.mxu0 0
      %559 = vmatmul.mubr.bf16.gmra.mrb[0].mxu0 %v347
      %v560 = vpop.f32.mrb[0].mxu0
      %v561 = vadd.f32 %v369, %v560
      %v562 = vpop.f32.mrb[0].mxu0
      %v563 = vadd.f32 %v373, %v562
      %v564 = vpop.f32.mrb[0].mxu0
      %v565 = vadd.f32 %v369, %v564
      %v566 = vpop.f32.mrb[0].mxu0
      %v567 = vadd.f32 %v373, %v566
      %568 = vdwg.mxu0
      %569 = vst [vmem:[%s315] sm:$0xff] %v491
      %570 = vst [vmem:[%s315 + $0x8] sm:$0xff] %v495
      %571 = vst [vmem:[%s315 + $0x10] sm:$0xff] %v501
      %572 = vst [vmem:[%s315 + $0x18] sm:$0xff] %v505
      %573 = vst [vmem:[%s315 + $0x20] sm:$0xff] %v511
      %574 = vst [vmem:[%s315 + $0x28] sm:$0xff] %v515
      %575 = vst [vmem:[%s315 + $0x30] sm:$0xff] %v521
      %576 = vst [vmem:[%s315 + $0x38] sm:$0xff] %v525
      %577 = vst [vmem:[%s315 + $0x40] sm:$0xff] %v531
      %578 = vst [vmem:[%s315 + $0x48] sm:$0xff] %v535
      %579 = vst [vmem:[%s315 + $0x50] sm:$0xff] %v541
      %580 = vst [vmem:[%s315 + $0x58] sm:$0xff] %v545
      %581 = vst [vmem:[%s315 + $0x60] sm:$0xff] %v551
      %582 = vst [vmem:[%s315 + $0x68] sm:$0xff] %v555
      %583 = vst [vmem:[%s315 + $0x70] sm:$0xff] %v561
      %584 = vst [vmem:[%s315 + $0x78] sm:$0xff] %v565
      %vm585 = vcmp.ge.f32.partialorder %v493, 0.0
      %vm586 = vcmp.ge.f32.partialorder %v497, 0.0
      %vm587 = vcmp.ge.f32.partialorder %v503, 0.0
      %vm588 = vcmp.ge.f32.partialorder %v507, 0.0
      %vm589 = vcmp.ge.f32.partialorder %v513, 0.0
      %vm590 = vcmp.ge.f32.partialorder %v517, 0.0
      %vm591 = vcmp.ge.f32.partialorder %v523, 0.0
      %vm592 = vcmp.ge.f32.partialorder %v527, 0.0
      %vm593 = vcmp.ge.f32.partialorder %v533, 0.0
      %vm594 = vcmp.ge.f32.partialorder %v537, 0.0
      %vm595 = vcmp.ge.f32.partialorder %v543, 0.0
      %vm596 = vcmp.ge.f32.partialorder %v547, 0.0
      %vm597 = vcmp.ge.f32.partialorder %v553, 0.0
      %vm598 = vcmp.ge.f32.partialorder %v557, 0.0
      %vm599 = vcmp.ge.f32.partialorder %v563, 0.0
      %vm600 = vcmp.ge.f32.partialorder %v567, 0.0
      %v601 = vld [vmem:[%s3] sm:$0x1]
      %v603 = vlaneseq
      %v604 = vshrl.u32 %v603, 7
      %v605 = vsub.s32 0, %v604
      %v606 = vrot.slane %v601, %v605
      %v608 = vmul.f32 %v606, %v493
      %v609 = vmul.f32 %v606, %v497
      %v610 = vmul.f32 %v606, %v503
      %v611 = vmul.f32 %v606, %v507
      %v612 = vmul.f32 %v606, %v513
      %v613 = vmul.f32 %v606, %v517
      %v614 = vmul.f32 %v606, %v523
      %v615 = vmul.f32 %v606, %v527
      %v616 = vmul.f32 %v606, %v533
      %v617 = vmul.f32 %v606, %v537
      %v618 = vmul.f32 %v606, %v543
      %v619 = vmul.f32 %v606, %v547
      %v620 = vmul.f32 %v606, %v553
      %v621 = vmul.f32 %v606, %v557
      %v622 = vmul.f32 %v606, %v563
      %v623 = vmul.f32 %v606, %v567
      %v624 = vsel %vm585, %v493, %v608
      %v625 = vsel %vm586, %v497, %v609
      %v626 = vsel %vm587, %v503, %v610
      %v627 = vsel %vm588, %v507, %v611
      %v628 = vsel %vm589, %v513, %v612
      %v629 = vsel %vm590, %v517, %v613
      %v630 = vsel %vm591, %v523, %v614
      %v631 = vsel %vm592, %v527, %v615
      %v632 = vsel %vm593, %v533, %v616
      %v633 = vsel %vm594, %v537, %v617
      %v634 = vsel %vm595, %v543, %v618
      %v635 = vsel %vm596, %v547, %v619
      %v636 = vsel %vm597, %v553, %v620
      %v637 = vsel %vm598, %v557, %v621
      %v638 = vsel %vm599, %v563, %v622
      %v639 = vsel %vm600, %v567, %v623
      %v640 = vpack.c.bf16 %v625, %v624
      %v641 = vpack.c.bf16 %v627, %v626
      %v642 = vpack.c.bf16 %v629, %v628
      %v643 = vpack.c.bf16 %v631, %v630
      %v644 = vpack.c.bf16 %v633, %v632
      %v645 = vpack.c.bf16 %v635, %v634
      %v646 = vpack.c.bf16 %v637, %v636
      %v647 = vpack.c.bf16 %v639, %v638
      %v648 = vld [vmem:[%s4] sm:$0xf]
      %v649 = vld [vmem:[%s4 + $0x4] sm:$0xf]
      %v650 = vld [vmem:[%s4 + $0x8] sm:$0xf]
      %v651 = vld [vmem:[%s4 + $0xc] sm:$0xf]
      %v652 = vld [vmem:[%s4 + $0x10] sm:$0xf]
      %v653 = vld [vmem:[%s4 + $0x14] sm:$0xf]
      %v654 = vld [vmem:[%s4 + $0x18] sm:$0xf]
      %v655 = vld [vmem:[%s4 + $0x1c] sm:$0xf]
      %v656 = vld [vmem:[%s4 + $0x20] sm:$0xf]
      %v657 = vld [vmem:[%s4 + $0x24] sm:$0xf]
      %v658 = vld [vmem:[%s4 + $0x28] sm:$0xf]
      %v659 = vld [vmem:[%s4 + $0x2c] sm:$0xf]
      %v660 = vld [vmem:[%s4 + $0x30] sm:$0xf]
      %v661 = vld [vmem:[%s4 + $0x34] sm:$0xf]
      %v662 = vld [vmem:[%s4 + $0x38] sm:$0xf]
      %v663 = vld [vmem:[%s4 + $0x3c] sm:$0xf]
      %v664 = vld [vmem:[%s5] sm:$0x1]
      %v666 = vlaneseq
      %v667 = vshrl.u32 %v666, 7
      %v668 = vsub.s32 0, %v667
      %v669 = vrot.slane %v664, %v668
      %v687 = vunpack.c.l.b16 %v648
      %v688 = vunpack.c.l.b16 %v649
      %v689 = vunpack.c.l.b16 %v650
      %v690 = vunpack.c.l.b16 %v651
      %v691 = vunpack.c.l.b16 %v652
      %v692 = vunpack.c.l.b16 %v653
      %v693 = vunpack.c.l.b16 %v654
      %v694 = vunpack.c.l.b16 %v655
      %v695 = vunpack.c.l.b16 %v656
      %v696 = vunpack.c.l.b16 %v657
      %v697 = vunpack.c.l.b16 %v658
      %v698 = vunpack.c.l.b16 %v659
      %v699 = vunpack.c.l.b16 %v660
      %v700 = vunpack.c.l.b16 %v661
      %v701 = vunpack.c.l.b16 %v662
      %v702 = vunpack.c.l.b16 %v663
      %v703 = vpack.c.b16 %v688, %v687
      %v704 = vpack.c.b16 %v690, %v689
      %v705 = vpack.c.b16 %v692, %v691
      %v706 = vpack.c.b16 %v694, %v693
      %v707 = vpack.c.b16 %v696, %v695
      %v708 = vpack.c.b16 %v698, %v697
      %v709 = vpack.c.b16 %v700, %v699
      %v710 = vpack.c.b16 %v702, %v701
      %719 = vmatprep.subr.bf16.mxu0 0
      %720 = vmatpush1.bf16.msra.mxu0 %v703
      %721 = vmatprep.subr.bf16.mxu0 0
      %722 = vmatpush1.bf16.msra.mxu0 %v704
      %723 = vmatprep.subr.bf16.mxu0 0
      %724 = vmatpush1.bf16.msra.mxu0 %v705
      %725 = vmatprep.subr.bf16.mxu0 0
      %726 = vmatpush1.bf16.msra.mxu0 %v706
      %727 = vmatprep.subr.bf16.mxu0 0
      %728 = vmatpush1.bf16.msra.mxu0 %v707
      %729 = vmatprep.subr.bf16.mxu0 0
      %730 = vmatpush1.bf16.msra.mxu0 %v708
      %731 = vmatprep.subr.bf16.mxu0 0
      %732 = vmatpush1.bf16.msra.mxu0 %v709
      %733 = vmatprep.subr.bf16.mxu0 0
      %734 = vmatpush1.bf16.msra.mxu0 %v710
      %735 = vmatprep.subr.bf16.mxu0 0
      %736 = vmatpush1.bf16.msra.mxu0 0
      %737 = vmatprep.subr.bf16.mxu0 0
      %738 = vmatpush1.bf16.msra.mxu0 0
      %739 = vmatprep.subr.bf16.mxu0 0
      %740 = vmatpush1.bf16.msra.mxu0 0
      %741 = vmatprep.subr.bf16.mxu0 0
      %742 = vmatpush1.bf16.msra.mxu0 0
      %743 = vmatprep.subr.bf16.mxu0 0
      %744 = vmatpush1.bf16.msra.mxu0 0
      %745 = vmatprep.subr.bf16.mxu0 0
      %746 = vmatpush1.bf16.msra.mxu0 0
      %747 = vmatprep.subr.bf16.mxu0 0
      %748 = vmatpush1.bf16.msra.mxu0 0
      %749 = vmatprep.subr.bf16.mxu0 0
      %750 = vmatpush1.bf16.msra.mxu0 0
      %751 = vmatprep.mubr.bf16.mxu0 0
      %752 = vmatmul.mubr.bf16.gmra.mrb[0].mxu0 %v640
      %v753 = vpop.f32.mrb[0].mxu0
      %v754 = vadd.f32 %v669, %v753
      %v755 = vpop.f32.mrb[0].mxu0
      %v756 = vpop.f32.mrb[0].mxu0
      %v757 = vadd.f32 %v669, %v756
      %v758 = vpop.f32.mrb[0].mxu0
      %759 = vmatprep.mubr.bf16.mxu0 0
      %760 = vmatmul.mubr.bf16.gmra.mrb[0].mxu0 %v641
      %v761 = vpop.f32.mrb[0].mxu0
      %v762 = vadd.f32 %v669, %v761
      %v763 = vpop.f32.mrb[0].mxu0
      %v764 = vpop.f32.mrb[0].mxu0
      %v765 = vadd.f32 %v669, %v764
      %v766 = vpop.f32.mrb[0].mxu0
      %767 = vmatprep.mubr.bf16.mxu0 0
      %768 = vmatmul.mubr.bf16.gmra.mrb[0].mxu0 %v642
      %v769 = vpop.f32.mrb[0].mxu0
      %v770 = vadd.f32 %v669, %v769
      %v771 = vpop.f32.mrb[0].mxu0
      %v772 = vpop.f32.mrb[0].mxu0
      %v773 = vadd.f32 %v669, %v772
      %v774 = vpop.f32.mrb[0].mxu0
      %775 = vmatprep.mubr.bf16.mxu0 0
      %776 = vmatmul.mubr.bf16.gmra.mrb[0].mxu0 %v643
      %v777 = vpop.f32.mrb[0].mxu0
      %v778 = vadd.f32 %v669, %v777
      %v779 = vpop.f32.mrb[0].mxu0
      %v780 = vpop.f32.mrb[0].mxu0
      %v781 = vadd.f32 %v669, %v780
      %v782 = vpop.f32.mrb[0].mxu0
      %783 = vmatprep.mubr.bf16.mxu0 0
      %784 = vmatmul.mubr.bf16.gmra.mrb[0].mxu0 %v644
      %v785 = vpop.f32.mrb[0].mxu0
      %v786 = vadd.f32 %v669, %v785
      %v787 = vpop.f32.mrb[0].mxu0
      %v788 = vpop.f32.mrb[0].mxu0
      %v789 = vadd.f32 %v669, %v788
      %v790 = vpop.f32.mrb[0].mxu0
      %791 = vmatprep.mubr.bf16.mxu0 0
      %792 = vmatmul.mubr.bf16.gmra.mrb[0].mxu0 %v645
      %v793 = vpop.f32.mrb[0].mxu0
      %v794 = vadd.f32 %v669, %v793
      %v795 = vpop.f32.mrb[0].mxu0
      %v796 = vpop.f32.mrb[0].mxu0
      %v797 = vadd.f32 %v669, %v796
      %v798 = vpop.f32.mrb[0].mxu0
      %799 = vmatprep.mubr.bf16.mxu0 0
      %800 = vmatmul.mubr.bf16.gmra.mrb[0].mxu0 %v646
      %v801 = vpop.f32.mrb[0].mxu0
      %v802 = vadd.f32 %v669, %v801
      %v803 = vpop.f32.mrb[0].mxu0
      %v804 = vpop.f32.mrb[0].mxu0
      %v805 = vadd.f32 %v669, %v804
      %v806 = vpop.f32.mrb[0].mxu0
      %807 = vmatprep.mubr.bf16.mxu0 0
      %808 = vmatmul.mubr.bf16.gmra.mrb[0].mxu0 %v647
      %v809 = vpop.f32.mrb[0].mxu0
      %v810 = vadd.f32 %v669, %v809
      %v811 = vpop.f32.mrb[0].mxu0
      %v812 = vpop.f32.mrb[0].mxu0
      %v813 = vadd.f32 %v669, %v812
      %v814 = vpop.f32.mrb[0].mxu0
      %815 = vdwg.mxu0
      %vm816 = vcmp.ge.f32.partialorder %v754, 0.0
      %vm817 = vcmp.ge.f32.partialorder %v757, 0.0
      %vm818 = vcmp.ge.f32.partialorder %v762, 0.0
      %vm819 = vcmp.ge.f32.partialorder %v765, 0.0
      %vm820 = vcmp.ge.f32.partialorder %v770, 0.0
      %vm821 = vcmp.ge.f32.partialorder %v773, 0.0
      %vm822 = vcmp.ge.f32.partialorder %v778, 0.0
      %vm823 = vcmp.ge.f32.partialorder %v781, 0.0
      %vm824 = vcmp.ge.f32.partialorder %v786, 0.0
      %vm825 = vcmp.ge.f32.partialorder %v789, 0.0
      %vm826 = vcmp.ge.f32.partialorder %v794, 0.0
      %vm827 = vcmp.ge.f32.partialorder %v797, 0.0
      %vm828 = vcmp.ge.f32.partialorder %v802, 0.0
      %vm829 = vcmp.ge.f32.partialorder %v805, 0.0
      %vm830 = vcmp.ge.f32.partialorder %v810, 0.0
      %vm831 = vcmp.ge.f32.partialorder %v813, 0.0
      %v832 = vld [vmem:[%s6] sm:$0x1]
      %v834 = vlaneseq
      %v835 = vshrl.u32 %v834, 7
      %v836 = vsub.s32 0, %v835
      %v837 = vrot.slane %v832, %v836
      %v839 = vmul.f32 %v837, %v754
      %v840 = vmul.f32 %v837, %v757
      %v841 = vmul.f32 %v837, %v762
      %v842 = vmul.f32 %v837, %v765
      %v843 = vmul.f32 %v837, %v770
      %v844 = vmul.f32 %v837, %v773
      %v845 = vmul.f32 %v837, %v778
      %v846 = vmul.f32 %v837, %v781
      %v847 = vmul.f32 %v837, %v786
      %v848 = vmul.f32 %v837, %v789
      %v849 = vmul.f32 %v837, %v794
      %v850 = vmul.f32 %v837, %v797
      %v851 = vmul.f32 %v837, %v802
      %v852 = vmul.f32 %v837, %v805
      %v853 = vmul.f32 %v837, %v810
      %v854 = vmul.f32 %v837, %v813
      %v855 = vsel %vm816, %v754, %v839
      %v856 = vsel %vm817, %v757, %v840
      %v857 = vsel %vm818, %v762, %v841
      %v858 = vsel %vm819, %v765, %v842
      %v859 = vsel %vm820, %v770, %v843
      %v860 = vsel %vm821, %v773, %v844
      %v861 = vsel %vm822, %v778, %v845
      %v862 = vsel %vm823, %v781, %v846
      %v863 = vsel %vm824, %v786, %v847
      %v864 = vsel %vm825, %v789, %v848
      %v865 = vsel %vm826, %v794, %v849
      %v866 = vsel %vm827, %v797, %v850
      %v867 = vsel %vm828, %v802, %v851
      %v868 = vsel %vm829, %v805, %v852
      %v869 = vsel %vm830, %v810, %v853
      %v870 = vsel %vm831, %v813, %v854
      %v871 = vpack.c.bf16 %v856, %v855
      %v872 = vpack.c.bf16 %v858, %v857
      %v873 = vpack.c.bf16 %v860, %v859
      %v874 = vpack.c.bf16 %v862, %v861
      %v875 = vpack.c.bf16 %v864, %v863
      %v876 = vpack.c.bf16 %v866, %v865
      %v877 = vpack.c.bf16 %v868, %v867
      %v878 = vpack.c.bf16 %v870, %v869
      %v887 = vunpack.c.l.b16 %v871
      %v888 = vunpack.c.h.b16 %v871
      %v889 = vunpack.c.l.b16 %v872
      %v890 = vunpack.c.h.b16 %v872
      %v891 = vunpack.c.l.b16 %v873
      %v892 = vunpack.c.h.b16 %v873
      %v893 = vunpack.c.l.b16 %v874
      %v894 = vunpack.c.h.b16 %v874
      %v895 = vunpack.c.l.b16 %v875
      %v896 = vunpack.c.h.b16 %v875
      %v897 = vunpack.c.l.b16 %v876
      %v898 = vunpack.c.h.b16 %v876
      %v899 = vunpack.c.l.b16 %v877
      %v900 = vunpack.c.h.b16 %v877
      %v901 = vunpack.c.l.b16 %v878
      %v902 = vunpack.c.h.b16 %v878
      %v903 = vpack.c.b16 %v887, %v887
      %v904 = vpack.c.b16 %v888, %v888
      %v905 = vpack.c.b16 %v889, %v889
      %v906 = vpack.c.b16 %v890, %v890
      %v907 = vpack.c.b16 %v891, %v891
      %v908 = vpack.c.b16 %v892, %v892
      %v909 = vpack.c.b16 %v893, %v893
      %v910 = vpack.c.b16 %v894, %v894
      %v911 = vpack.c.b16 %v895, %v895
      %v912 = vpack.c.b16 %v896, %v896
      %v913 = vpack.c.b16 %v897, %v897
      %v914 = vpack.c.b16 %v898, %v898
      %v915 = vpack.c.b16 %v899, %v899
      %v916 = vpack.c.b16 %v900, %v900
      %v917 = vpack.c.b16 %v901, %v901
      %v918 = vpack.c.b16 %v902, %v902
      %935 = vst [vmem:[%s321] sm:$0xf] %v903
      %936 = vst [vmem:[%s321 + $0x4] sm:$0xf] %v904
      %937 = vst [vmem:[%s321 + $0x8] sm:$0xf] %v905
      %938 = vst [vmem:[%s321 + $0xc] sm:$0xf] %v906
      %939 = vst [vmem:[%s321 + $0x10] sm:$0xf] %v907
      %940 = vst [vmem:[%s321 + $0x14] sm:$0xf] %v908
      %941 = vst [vmem:[%s321 + $0x18] sm:$0xf] %v909
      %942 = vst [vmem:[%s321 + $0x1c] sm:$0xf] %v910
      %943 = vst [vmem:[%s321 + $0x20] sm:$0xf] %v911
      %944 = vst [vmem:[%s321 + $0x24] sm:$0xf] %v912
      %945 = vst [vmem:[%s321 + $0x28] sm:$0xf] %v913
      %946 = vst [vmem:[%s321 + $0x2c] sm:$0xf] %v914
      %947 = vst [vmem:[%s321 + $0x30] sm:$0xf] %v915
      %948 = vst [vmem:[%s321 + $0x34] sm:$0xf] %v916
      %949 = vst [vmem:[%s321 + $0x38] sm:$0xf] %v917
      %950 = vst [vmem:[%s321 + $0x3c] sm:$0xf] %v918
      %s951 = smul.u32 16, %s20
      %p952 = scmp.lt.s32.totalorder %s951, 31
      %s953 = scalar_select %p952, %s951, 31
      %s954 = smul.addr %s953, 8
      %s955 = scalar_lea.vmem %s7, %s954
      %s956 = smul.u32 16, %s20
      %p957 = scmp.lt.s32.totalorder %s956, 31
      %s958 = scalar_select %p957, %s956, 31
      %s959 = smul.addr %s958, 4
      %s960 = scalar_lea.vmem %s8, %s959
      // Predicated region
      $region49: #{dni_forward.1} parent=47 // pred_check
        %p961 = pneg %p190
      $region50: #{dni_forward.1} parent=47 // pred_check_branch
        %963 = sbr.rel (%p961) target = $region52
      $region51: #{dni_forward.1} parent=47 // pred_region
        %s964 = smul.u32 16, %s20
      $region52: #{dni_forward.1} parent=47 // pred_fallthru
        _
      // Predicated region
      $region53: #{dni_forward.1} parent=47 // pred_check
        %p965 = pneg %p216
      $region54: #{dni_forward.1} parent=47 // pred_check_branch
        %967 = sbr.rel (%p965) target = $region56
      $region55: #{dni_forward.1} parent=47 // pred_region
        %s968 = smul.u32 16, %s20
      $region56: #{dni_forward.1} parent=47 // pred_fallthru
        _
    $region48: #{dni_forward.1} parent=5 // pred_fallthru
      _
    %p969 = scmp.le.s32.totalorder 2, %s15
    // Predicated region
    $region57: #{dni_forward.1} parent=5 // pred_check
      %p970 = pneg %p969
    $region58: #{dni_forward.1} parent=5 // pred_check_branch
      %972 = sbr.rel (%p970) target = $region60
    $region59: #{dni_forward.1} parent=5 // pred_region
      %s973 = ssub.s32 %s15, 2
      // Predicated region
      $region61: #{dni_forward.1} parent=59 // pred_check
        %p974 = pneg %p196
      $region62: #{dni_forward.1} parent=59 // pred_check_branch
        %976 = sbr.rel (%p974) target = $region64
      $region63: #{dni_forward.1} parent=59 // pred_region
        %s977 = smul.u32 16, %s21
        %p978 = scmp.lt.s32.totalorder %s977, 31
        %s979 = scalar_select %p978, %s977, 31
        %s980 = smul.addr %s979, 8
        %s981 = scalar_lea.vmem %s7, %s980
      $region64: #{dni_forward.1} parent=59 // pred_fallthru
        _
      // Predicated region
      $region65: #{dni_forward.1} parent=59 // pred_check
        %p982 = pneg %p222
      $region66: #{dni_forward.1} parent=59 // pred_check_branch
        %984 = sbr.rel (%p982) target = $region68
      $region67: #{dni_forward.1} parent=59 // pred_region
        %s985 = smul.u32 16, %s21
        %p986 = scmp.lt.s32.totalorder %s985, 31
        %s987 = scalar_select %p986, %s985, 31
        %s988 = smul.addr %s987, 4
        %s989 = scalar_lea.vmem %s8, %s988
      $region68: #{dni_forward.1} parent=59 // pred_fallthru
        _
    $region60: #{dni_forward.1} parent=5 // pred_fallthru
      _
  $region6: #{dni_forward.1} parent=0 // loop_footer
    %s19 = sadd.s32 1, %s15
  $region7: #{dni_forward.1} parent=0 // loop_footer_branch
    %14 = sbr.rel target = $region3
  $region8: #{dni_forward.1} parent=0 // loop_exit
    _

</llo_original>
